<compile_context>
chip_gen: v6e
topology: v6e:2x2x1
jax: 0.10.0
libtpu: 0.0.40
codegen_flags: <defaults>
</compile_context>

<pallas_src>
import functools

import numpy as np
import jax
import jax.numpy as jnp
from jax import lax
from jax.experimental import pallas as pl
from jax.experimental.pallas import tpu as pltpu


LANE = 128


def _round_up(x, m):
    return (x + m - 1) // m * m


# ------------------------------- Pallas kernel -------------------------------

def _conv_kernel(x_ref, w_ref, b_ref, o_ref, *, stride, apply_act, negative_slope):
    """One conv column: fused im2col (K shifted slices) + K accumulating dots
    + bias + LeakyReLU.

    x_ref: (Hceil, stride*Cin_p) bf16   (phase-packed, zero-padded input)
    w_ref: (K, Cin_p, Cout_p)    bf16
    b_ref: (1, Cout_p)           f32
    o_ref: (Hout, Cout_p)        bf16
    """
    K, cin, coutp = w_ref.shape
    hout = o_ref.shape[0]

    # Load the tile once and upcast; all tap windows are then static slices of
    # an f32 value (avoids packed-dtype odd-offset relayouts on the ref).
    xf = x_ref[...].astype(jnp.float32)

    acc = jnp.zeros((hout, coutp), jnp.float32)
    for k in range(K):                      # static unroll: K accumulating dots
        h0 = k // stride
        c0 = (k % stride) * cin
        xk = xf[h0:h0 + hout, c0:c0 + cin]  # (hout, cin) f32 (exact bf16 values)
        if cin == 1:
            # Network input (Cin == 1): outer product on the VPU, skip the MXU.
            acc = acc + xk * w_ref[k].astype(jnp.float32)
        else:
            # bf16 MXU operands, f32 accumulation.
            acc = acc + jnp.dot(xk.astype(jnp.bfloat16), w_ref[k],
                                preferred_element_type=jnp.float32)

    acc = acc + b_ref[...]                  # f32 bias
    if apply_act:                           # LeakyReLU in f32 (v5e-safe epilogue)
        acc = jnp.where(acc >= 0.0, acc, acc * negative_slope)
    o_ref[...] = acc.astype(o_ref.dtype)


def conv_layer(x, w, b, *, stride, pad, apply_act, negative_slope):
    """Conv2d((K,1), stride=(stride,1), padding=(pad,0)) [+ LeakyReLU].

    x: (M, H, Cin_p) bf16 ; w: (K, Cin_p, Cout_p) bf16 ; b: (1, Cout_p) f32.
    Returns (M, Hout, Cout_p) bf16.
    """
    M, H, cin = x.shape
    K, _, coutp = w.shape
    Hp = H + 2 * pad
    Hout = (Hp - K) // stride + 1
    Hceil = -(-Hp // stride)                # ceil(Hp / stride)

    # Zero-pad H (conv padding + phase alignment) and pack the `stride` phases
    # of H into the lane axis: packed[m, hh, j*cin + c] = padded[m, hh*stride + j, c].
    # Tap k / output row h then reads packed[h + k//stride, (k%stride)*cin : +cin].
    xp = jnp.pad(x, ((0, 0), (pad, pad + Hceil * stride - Hp), (0, 0)))
    xp = xp.reshape(M, Hceil, stride * cin)

    kernel = functools.partial(_conv_kernel, stride=stride,
                               apply_act=apply_act, negative_slope=negative_slope)

    # VMEM working set estimate (double-buffered inputs/outputs); only request
    # an explicit limit when large (never triggers at demo sizes).
    est = 2 * 2 * (Hceil * stride * cin + K * cin * coutp + Hout * coutp) + 4 * coutp
    vmem_limit = None if est < (24 << 20) else min(est + (4 << 20), 64 << 20)

    return pl.pallas_call(
        kernel,
        out_shape=jax.ShapeDtypeStruct((M, Hout, coutp), jnp.bfloat16),
        grid=(M,),
        in_specs=[
            # One (squeezed) period-column per grid step.
            pl.BlockSpec((None, Hceil, stride * cin), lambda m: (m, 0, 0)),
            # Constant index_maps: weights / bias are DMA'd once and stay resident.
            pl.BlockSpec((K, cin, coutp), lambda m: (0, 0, 0)),
            pl.BlockSpec((1, coutp), lambda m: (0, 0)),
        ],
        out_specs=pl.BlockSpec((None, Hout, coutp), lambda m: (m, 0, 0)),
        compiler_params=pltpu.CompilerParams(
            dimension_semantics=("parallel",), vmem_limit_bytes=vmem_limit),
    )(xp, w, b)


# ------------------------------ module (params) ------------------------------

def init_params(key, *, in_channels=1, out_channels=1, kernel_sizes=(5, 3),
                channels=8, downsample_scales=(3, 3, 3, 3, 1),
                channel_increasing_factor=4, max_downsample_channels=32):
    # NOTE: use_weight_norm=True is only a reparametrization of the weights; the
    # deterministically initialized tensors below ARE the effective weights, so
    # the forward pass is identical without explicit weight-norm machinery.
    assert len(kernel_sizes) == 2
    assert kernel_sizes[0] % 2 == 1 and kernel_sizes[1] % 2 == 1
    params = []
    in_chs = in_channels
    out_chs = channels
    for ds in downsample_scales:
        key, kw, kb = jax.random.split(key, 3)
        w = 0.1 * jax.random.normal(kw, (out_chs, in_chs, kernel_sizes[0], 1), jnp.float32)
        b = 0.01 * jax.random.normal(kb, (out_chs,), jnp.float32)
        params.append(dict(w=w, b=b, stride=int(ds),
                           pad=(kernel_sizes[0] - 1) // 2, act=True))
        in_chs = out_chs
        out_chs = min(out_chs * channel_increasing_factor, max_downsample_channels)
    key, kw, kb = jax.random.split(key, 3)
    w = 0.1 * jax.random.normal(kw, (out_channels, in_chs, kernel_sizes[1] - 1, 1), jnp.float32)
    b = 0.01 * jax.random.normal(kb, (out_channels,), jnp.float32)
    params.append(dict(w=w, b=b, stride=1, pad=(kernel_sizes[1] - 1) // 2, act=False))
    return params


def pack_params(params):
    """Convert PyTorch-layout (OIHW) weights into the kernel layout ONCE:
    (K, Cin_p, Cout_p) bf16, channels zero-padded to the 128-lane width."""
    packed = []
    for p in params:
        cout, cin, K, _ = p["w"].shape
        cin_p = cin if cin == 1 else _round_up(cin, LANE)
        cout_p = _round_up(cout, LANE)
        w_kio = jnp.transpose(p["w"][:, :, :, 0], (2, 1, 0)).astype(jnp.bfloat16)
        w = jnp.zeros((K, cin_p, cout_p), jnp.bfloat16).at[:, :cin, :cout].set(w_kio)
        b = jnp.zeros((1, cout_p), jnp.float32).at[0, :cout].set(p["b"])
        packed.append(dict(w=w, b=b, stride=p["stride"], pad=p["pad"],
                           act=p["act"], cout=cout))
    return packed


# ------------------------------------ forward ---------------------------------

def forward(packed, x, *, period=3, negative_slope=0.1):
    """x: (B, in_channels, T) -> list of per-layer NCHW outputs + flattened final."""
    b, c, t = x.shape
    if t % period != 0:
        n_pad = period - t % period
        x = jnp.pad(x, ((0, 0), (0, 0), (0, n_pad)), mode="reflect")
        t += n_pad
    h0 = t // period
    # NCHW (B, C, H, W) -> internal (B*period, H, C), bf16.
    x = x.reshape(b, c, h0, period)
    x = jnp.transpose(x, (0, 3, 2, 1)).reshape(b * period, h0, c)
    x = x.astype(jnp.bfloat16)

    feats = []
    for p in packed:
        x = conv_layer(x, p["w"], p["b"], stride=p["stride"], pad=p["pad"],
                       apply_act=p["act"], negative_slope=negative_slope)
        feats.append((x, p["cout"]))

    # Un-pad channels / transpose to NCHW ONCE, after all Pallas work.
    outs = []
    for y, cout in feats[:-1]:
        hh = y.shape[1]
        y = y[:, :, :cout].astype(jnp.float32).reshape(b, period, hh, cout)
        outs.append(jnp.transpose(y, (0, 3, 2, 1)))        # (B, C, H, W)
    y, cout = feats[-1]
    hh = y.shape[1]
    y = y[:, :, :cout].astype(jnp.float32).reshape(b, period, hh, cout)
    y = jnp.transpose(y, (0, 3, 2, 1))                     # (B, C, H, W)
    outs.append(y.reshape(b, -1))                          # torch.flatten(x, 1, -1)
    return outs


# ------------------------------ pure-JAX reference ----------------------------

def ref_forward(params, x, *, period=3, negative_slope=0.1):
    """Reference with the same precision path (bf16 operands / storage, f32 math)."""
    b, c, t = x.shape
    if t % period != 0:
        n_pad = period - t % period
        x = jnp.pad(x, ((0, 0), (0, 0), (0, n_pad)), mode="reflect")
        t += n_pad
    x = x.reshape(b, c, t // period, period).astype(jnp.bfloat16)
    outs = []
    for p in params:
        y = lax.conv_general_dilated(
            x, p["w"].astype(jnp.bfloat16),
            window_strides=(p["stride"], 1),
            padding=((p["pad"], p["pad"]), (0, 0)),
            dimension_numbers=("NCHW", "OIHW", "NCHW"),
            preferred_element_type=jnp.float32)
        y = y + p["b"][None, :, None, None]
        if p["act"]:
            y = jnp.where(y >= 0, y, negative_slope * y)
        x = y.astype(jnp.bfloat16)          # inter-layer storage dtype (matches kernel)
        if p["act"]:
            outs.append(x.astype(jnp.float32))
    outs.append(x.astype(jnp.float32).reshape(b, -1))
    return outs


# ------------------------------------ main ------------------------------------

if __name__ == "__main__":
    key = jax.random.PRNGKey(0)
    kp, kx = jax.random.split(key)

    # Small-but-faithful configuration (same structure as the PyTorch defaults,
    # scaled-down channel counts): 1 -> 8 -> 32 -> 32 -> 32 -> 32 -> 1.
    params = init_params(
        kp, in_channels=1, out_channels=1, kernel_sizes=(5, 3),
        channels=8, downsample_scales=(3, 3, 3, 3, 1),
        channel_increasing_factor=4, max_downsample_channels=32)
    packed = pack_params(params)

    # T = 50 is not divisible by period=3 -> exercises the reflect-pad branch.
    x = jax.random.normal(kx, (2, 1, 50), dtype=jnp.float32)

    outs = forward(packed, x, period=3, negative_slope=0.1)
    outs = jax.block_until_ready(outs)

    refs = ref_forward(params, x, period=3, negative_slope=0.1)
    assert len(outs) == len(refs)
    for o, r in zip(outs, refs):
        assert o.shape == r.shape, (o.shape, r.shape)
        np.testing.assert_allclose(np.asarray(o), np.asarray(r), rtol=2e-2, atol=2e-2)

    print("KERNEL_OK")
</pallas_src>

<mosaic_0001>
module attributes {stable_mosaic.version = 11 : i64} {
  func.func @_conv_kernel(%arg0: i32, %arg1: memref<1x7x3xbf16, #tpu.memory_space<vmem>>, %arg2: memref<5x1x128xbf16, #tpu.memory_space<vmem>>, %arg3: memref<1x128xf32, #tpu.memory_space<vmem>>, %arg4: memref<1x6x128xbf16, #tpu.memory_space<vmem>>) attributes {dimension_semantics = [#tpu.dimension_semantics<parallel>], iteration_bounds = array<i64: 6>, scalar_prefetch = 0 : i64, scratch_operands = 0 : i64, tpu.core_type = #tpu.core_type<tc>, window_params = [{transform_indices = @transform_0, window_bounds = array<i64: 1, 7, 3>}, {pipeline_mode = #tpu.pipeline_mode<synchronous>, transform_indices = @transform_1, window_bounds = array<i64: 5, 1, 128>}, {pipeline_mode = #tpu.pipeline_mode<synchronous>, transform_indices = @transform_2, window_bounds = array<i64: 1, 128>}, {transform_indices = @transform_3, window_bounds = array<i64: 1, 6, 128>}]} {
    %c0 = arith.constant 0 : index
    %c0_0 = arith.constant 0 : index
    %c0_1 = arith.constant 0 : index
    %0 = vector.load %arg1[%c0, %c0_0, %c0_1] : memref<1x7x3xbf16, #tpu.memory_space<vmem>>, vector<1x7x3xbf16>
    %1 = vector.shape_cast %0 : vector<1x7x3xbf16> to vector<7x3xbf16>
    %2 = arith.extf %1 : vector<7x3xbf16> to vector<7x3xf32>
    %cst = arith.constant 0.000000e+00 : f32
    %3 = vector.broadcast %cst : f32 to vector<6x128xf32>
    %4 = vector.extract_strided_slice %2 {offsets = [0, 0], sizes = [6, 1], strides = [1, 1]} : vector<7x3xf32> to vector<6x1xf32>
    %c0_2 = arith.constant 0 : index
    %c0_3 = arith.constant 0 : index
    %c0_4 = arith.constant 0 : index
    %5 = vector.load %arg2[%c0_2, %c0_3, %c0_4] : memref<5x1x128xbf16, #tpu.memory_space<vmem>>, vector<1x1x128xbf16>
    %6 = vector.shape_cast %5 : vector<1x1x128xbf16> to vector<1x128xbf16>
    %7 = arith.extf %6 : vector<1x128xbf16> to vector<1x128xf32>
    %8 = vector.broadcast %4 : vector<6x1xf32> to vector<6x128xf32>
    %9 = vector.broadcast %7 : vector<1x128xf32> to vector<6x128xf32>
    %10 = arith.mulf %8, %9 : vector<6x128xf32>
    %11 = arith.addf %3, %10 : vector<6x128xf32>
    %12 = vector.extract_strided_slice %2 {offsets = [0, 1], sizes = [6, 1], strides = [1, 1]} : vector<7x3xf32> to vector<6x1xf32>
    %c1 = arith.constant 1 : index
    %c0_5 = arith.constant 0 : index
    %c0_6 = arith.constant 0 : index
    %13 = vector.load %arg2[%c1, %c0_5, %c0_6] : memref<5x1x128xbf16, #tpu.memory_space<vmem>>, vector<1x1x128xbf16>
    %14 = vector.shape_cast %13 : vector<1x1x128xbf16> to vector<1x128xbf16>
    %15 = arith.extf %14 : vector<1x128xbf16> to vector<1x128xf32>
    %16 = vector.broadcast %12 : vector<6x1xf32> to vector<6x128xf32>
    %17 = vector.broadcast %15 : vector<1x128xf32> to vector<6x128xf32>
    %18 = arith.mulf %16, %17 : vector<6x128xf32>
    %19 = arith.addf %11, %18 : vector<6x128xf32>
    %20 = vector.extract_strided_slice %2 {offsets = [0, 2], sizes = [6, 1], strides = [1, 1]} : vector<7x3xf32> to vector<6x1xf32>
    %c2 = arith.constant 2 : index
    %c0_7 = arith.constant 0 : index
    %c0_8 = arith.constant 0 : index
    %21 = vector.load %arg2[%c2, %c0_7, %c0_8] : memref<5x1x128xbf16, #tpu.memory_space<vmem>>, vector<1x1x128xbf16>
    %22 = vector.shape_cast %21 : vector<1x1x128xbf16> to vector<1x128xbf16>
    %23 = arith.extf %22 : vector<1x128xbf16> to vector<1x128xf32>
    %24 = vector.broadcast %20 : vector<6x1xf32> to vector<6x128xf32>
    %25 = vector.broadcast %23 : vector<1x128xf32> to vector<6x128xf32>
    %26 = arith.mulf %24, %25 : vector<6x128xf32>
    %27 = arith.addf %19, %26 : vector<6x128xf32>
    %28 = vector.extract_strided_slice %2 {offsets = [1, 0], sizes = [6, 1], strides = [1, 1]} : vector<7x3xf32> to vector<6x1xf32>
    %c3 = arith.constant 3 : index
    %c0_9 = arith.constant 0 : index
    %c0_10 = arith.constant 0 : index
    %29 = vector.load %arg2[%c3, %c0_9, %c0_10] : memref<5x1x128xbf16, #tpu.memory_space<vmem>>, vector<1x1x128xbf16>
    %30 = vector.shape_cast %29 : vector<1x1x128xbf16> to vector<1x128xbf16>
    %31 = arith.extf %30 : vector<1x128xbf16> to vector<1x128xf32>
    %32 = vector.broadcast %28 : vector<6x1xf32> to vector<6x128xf32>
    %33 = vector.broadcast %31 : vector<1x128xf32> to vector<6x128xf32>
    %34 = arith.mulf %32, %33 : vector<6x128xf32>
    %35 = arith.addf %27, %34 : vector<6x128xf32>
    %36 = vector.extract_strided_slice %2 {offsets = [1, 1], sizes = [6, 1], strides = [1, 1]} : vector<7x3xf32> to vector<6x1xf32>
    %c4 = arith.constant 4 : index
    %c0_11 = arith.constant 0 : index
    %c0_12 = arith.constant 0 : index
    %37 = vector.load %arg2[%c4, %c0_11, %c0_12] : memref<5x1x128xbf16, #tpu.memory_space<vmem>>, vector<1x1x128xbf16>
    %38 = vector.shape_cast %37 : vector<1x1x128xbf16> to vector<1x128xbf16>
    %39 = arith.extf %38 : vector<1x128xbf16> to vector<1x128xf32>
    %40 = vector.broadcast %36 : vector<6x1xf32> to vector<6x128xf32>
    %41 = vector.broadcast %39 : vector<1x128xf32> to vector<6x128xf32>
    %42 = arith.mulf %40, %41 : vector<6x128xf32>
    %43 = arith.addf %35, %42 : vector<6x128xf32>
    %c0_13 = arith.constant 0 : index
    %c0_14 = arith.constant 0 : index
    %44 = vector.load %arg3[%c0_13, %c0_14] : memref<1x128xf32, #tpu.memory_space<vmem>>, vector<1x128xf32>
    %45 = vector.broadcast %44 : vector<1x128xf32> to vector<6x128xf32>
    %46 = arith.addf %43, %45 : vector<6x128xf32>
    %cst_15 = arith.constant 0.000000e+00 : f32
    %47 = vector.broadcast %cst_15 : f32 to vector<6x128xf32>
    %48 = arith.cmpf oge, %46, %47 : vector<6x128xf32>
    %cst_16 = arith.constant 1.000000e-01 : f32
    %49 = vector.broadcast %cst_16 : f32 to vector<6x128xf32>
    %50 = arith.mulf %46, %49 : vector<6x128xf32>
    %51 = arith.select %48, %46, %50 : vector<6x128xi1>, vector<6x128xf32>
    %52 = arith.truncf %51 : vector<6x128xf32> to vector<6x128xbf16>
    %c0_17 = arith.constant 0 : index
    %c0_18 = arith.constant 0 : index
    %c0_19 = arith.constant 0 : index
    %53 = vector.load %arg4[%c0_17, %c0_18, %c0_19] : memref<1x6x128xbf16, #tpu.memory_space<vmem>>, vector<1x6x128xbf16>
    %54 = vector.shape_cast %53 : vector<1x6x128xbf16> to vector<6x128xbf16>
    %55 = vector.shape_cast %52 : vector<6x128xbf16> to vector<1x6x128xbf16>
    tpu.vector_store %arg4[%c0_17, %c0_18, %c0_19], %55 {strides = array<i32>} : memref<1x6x128xbf16, #tpu.memory_space<vmem>>, vector<1x6x128xbf16>,
    return
  }
  func.func @transform_0(%arg0: i32) -> (i32, i32, i32) {
    %c0_i32 = arith.constant 0 : i32
    %c0_i32_0 = arith.constant 0 : i32
    %c0_i32_1 = arith.constant 0 : i32
    return %arg0, %c0_i32, %c0_i32_0 : i32, i32, i32
  }
  func.func @transform_1(%arg0: i32) -> (i32, i32, i32) {
    %c0_i32 = arith.constant 0 : i32
    %c0_i32_0 = arith.constant 0 : i32
    %c0_i32_1 = arith.constant 0 : i32
    %c0_i32_2 = arith.constant 0 : i32
    return %c0_i32, %c0_i32_0, %c0_i32_1 : i32, i32, i32
  }
  func.func @transform_2(%arg0: i32) -> (i32, i32) {
    %c0_i32 = arith.constant 0 : i32
    %c0_i32_0 = arith.constant 0 : i32
    %c0_i32_1 = arith.constant 0 : i32
    return %c0_i32, %c0_i32_0 : i32, i32
  }
  func.func @transform_3(%arg0: i32) -> (i32, i32, i32) {
    %c0_i32 = arith.constant 0 : i32
    %c0_i32_0 = arith.constant 0 : i32
    %c0_i32_1 = arith.constant 0 : i32
    return %arg0, %c0_i32, %c0_i32_0 : i32, i32, i32
  }
}

</mosaic_0001>

<llo_original>
// kernel: tpu_custom_call.1
$region0: #{tpu_custom_call.1}
  #allocation0 [shape = 'u32[]', space=smem, size = 0x4, offset = 0x4, fixed_abs, tag = 'smem constant byte address 0x4 - core index']
  #allocation1 [shape = 'u32[144,128]{1,0:T(1,128)}', space=vmem, size = 0x12000, scoped, tag = 'internal scratch']
  %s0 = inlined_call_operand.vmem [shape: bf16[6,7,3], index: 0, kind: input, shape index: {}]
  %s1 = inlined_call_operand.vmem [shape: bf16[5,1,128], index: 1, kind: input, shape index: {}]
  %s2 = inlined_call_operand.vmem [shape: f32[1,128], index: 2, kind: input, shape index: {}]
  %s3 = inlined_call_operand.hbm [shape: bf16[6,6,128], index: 3, kind: output, shape index: {}]
  %s4 = sld [smem:[#allocation0]]
  $region45: #{tpu_custom_call.1} parent=0
    _
  %s6 = ssub.s32 1, %s4
  %s7 = scalar_select 0, %s6, %s4
  $region1: #{tpu_custom_call.1} parent=0
    #allocation2 [shape = 'u8[4096]{0}', space=vmem, size = 0x1000, scoped, tag = 'output window, operand 0']
    #allocation3 [shape = 's32[2]{0}', space=sflag, size = 0x8, scoped, tag = 'scoped memory for tpu_custom_call.1']
    %8 = vsyncpa [#allocation3], 0
    %s9 = scalar_lea.sflag [#allocation3], 1
    %10 = vsyncpa %s9, 0
    loop: start=0, step=1, limit=8
    $region2: #{tpu_custom_call.1} parent=1 // loop_pre_header
      _
    $region3: #{tpu_custom_call.1} parent=1 // loop_header
      %s12 = sphi 0, %s16
      %p13 = scmp.ge.s32.totalorder %s12, 8
      %s22 = sphi 0, %s24
      %s25 = sphi 0, %s22
      %s26 = sphi 0, %s25
      %s42 = sphi 0, %s26
      %s46 = sphi 0, %s46
      %s48 = sphi 0, %s46
      %s49 = sphi 0, %s48
      %s63 = sphi 0, %s49
      %s67 = sphi 0, %s67
      %s69 = sphi 0, %s67
      %s70 = sphi 0, %s69
      %s84 = sphi 0, %s70
      %s90 = sphi 0, %s92
      %s93 = sphi 0, %s90
      %s94 = sphi 0, %s93
      %s110 = sphi 0, %s94
    $region4: #{tpu_custom_call.1} parent=1 // loop_header_branch
      %15 = sbr.rel (%p13) target = $region8
    $region5: #{tpu_custom_call.1} parent=1 // loop_body
      %s17 = ssub.s32 %s12, 1
      %s18 = ssub.s32 %s12, 2
      %s19 = sadd.s32 %s12, 1
      %s20 = ssub.s32 %s12, %s19
      %p21 = scmp.eq.s32.totalorder %s20, 0
      %s23 = sadd.s32 %s22, 1
      %s24 = scalar_select %p21, %s22, %s23
      %p27 = pneg %p21
      %p28 = scmp.eq.s32.totalorder %s12, 5
      %p29 = por %p27, %p28
      %p30 = scmp.ne.s32.totalorder %s22, %s25
      %p31 = scmp.eq.s32.totalorder %s12, 0
      %p32 = por %p30, %p31
      %p33 = scmp.ne.s32.totalorder %s22, %s25
      %p34 = scmp.eq.s32.totalorder %s17, 5
      %p35 = por %p33, %p34
      %p36 = scmp.ne.s32.totalorder %s25, %s26
      %p37 = scmp.eq.s32.totalorder %s17, 0
      %p38 = por %p36, %p37
      %p39 = scmp.ne.s32.totalorder %s25, %s26
      %p40 = scmp.eq.s32.totalorder %s18, 5
      %p41 = por %p39, %p40
      %p43 = scmp.ne.s32.totalorder %s26, %s42
      %p44 = scmp.eq.s32.totalorder %s18, 0
      %p45 = por %p43, %p44
      %s47 = sadd.s32 %s46, 1
      %p50 = scmp.eq.s32.totalorder %s12, 5
      %p51 = scmp.ne.s32.totalorder %s46, %s48
      %p52 = scmp.eq.s32.totalorder %s12, 0
      %p53 = por %p51, %p52
      %p54 = scmp.ne.s32.totalorder %s46, %s48
      %p55 = scmp.eq.s32.totalorder %s17, 5
      %p56 = por %p54, %p55
      %p57 = scmp.ne.s32.totalorder %s48, %s49
      %p58 = scmp.eq.s32.totalorder %s17, 0
      %p59 = por %p57, %p58
      %p60 = scmp.ne.s32.totalorder %s48, %s49
      %p61 = scmp.eq.s32.totalorder %s18, 5
      %p62 = por %p60, %p61
      %p64 = scmp.ne.s32.totalorder %s49, %s63
      %p65 = scmp.eq.s32.totalorder %s18, 0
      %p66 = por %p64, %p65
      %s68 = sadd.s32 %s67, 1
      %p71 = scmp.eq.s32.totalorder %s12, 5
      %p72 = scmp.ne.s32.totalorder %s67, %s69
      %p73 = scmp.eq.s32.totalorder %s12, 0
      %p74 = por %p72, %p73
      %p75 = scmp.ne.s32.totalorder %s67, %s69
      %p76 = scmp.eq.s32.totalorder %s17, 5
      %p77 = por %p75, %p76
      %p78 = scmp.ne.s32.totalorder %s69, %s70
      %p79 = scmp.eq.s32.totalorder %s17, 0
      %p80 = por %p78, %p79
      %p81 = scmp.ne.s32.totalorder %s69, %s70
      %p82 = scmp.eq.s32.totalorder %s18, 5
      %p83 = por %p81, %p82
      %p85 = scmp.ne.s32.totalorder %s70, %s84
      %p86 = scmp.eq.s32.totalorder %s18, 0
      %p87 = por %p85, %p86
      %s88 = ssub.s32 %s12, %s19
      %p89 = scmp.eq.s32.totalorder %s88, 0
      %s91 = sadd.s32 %s90, 1
      %s92 = scalar_select %p89, %s90, %s91
      %p95 = pneg %p89
      %p96 = scmp.eq.s32.totalorder %s12, 5
      %p97 = por %p95, %p96
      %p98 = scmp.ne.s32.totalorder %s90, %s93
      %p99 = scmp.eq.s32.totalorder %s12, 0
      %p100 = por %p98, %p99
      %p101 = scmp.ne.s32.totalorder %s90, %s93
      %p102 = scmp.eq.s32.totalorder %s17, 5
      %p103 = por %p101, %p102
      %p104 = scmp.ne.s32.totalorder %s93, %s94
      %p105 = scmp.eq.s32.totalorder %s17, 0
      %p106 = por %p104, %p105
      %p107 = scmp.ne.s32.totalorder %s93, %s94
      %p108 = scmp.eq.s32.totalorder %s18, 5
      %p109 = por %p107, %p108
      %p111 = scmp.ne.s32.totalorder %s94, %s110
      %p112 = scmp.eq.s32.totalorder %s18, 0
      %p113 = por %p111, %p112
      %p114 = scmp.le.s32.totalorder 1, %s12
      %p115 = scmp.lt.s32.totalorder %s12, 7
      %p116 = pnand %p114, %p115
      %p117 = pneg %p116
      // Predicated region
      $region9: #{tpu_custom_call.1} parent=5 // pred_check
        _
      $region10: #{tpu_custom_call.1} parent=5 // pred_check_branch
        %119 = sbr.rel (%p116) target = $region12
      $region11: #{tpu_custom_call.1} parent=5 // pred_region
        %s120 = ssub.s32 %s12, 1
        // Predicated region
        $region13: #{tpu_custom_call.1} parent=11 // pred_check
          %p121 = pneg %p59
        $region14: #{tpu_custom_call.1} parent=11 // pred_check_branch
          %123 = sbr.rel (%p121) target = $region16
        $region15: #{tpu_custom_call.1} parent=11 // pred_region
          _
        $region16: #{tpu_custom_call.1} parent=11 // pred_fallthru
          _
        // Predicated region
        $region17: #{tpu_custom_call.1} parent=11 // pred_check
          %p124 = pneg %p80
        $region18: #{tpu_custom_call.1} parent=11 // pred_check_branch
          %126 = sbr.rel (%p124) target = $region20
        $region19: #{tpu_custom_call.1} parent=11 // pred_region
          _
        $region20: #{tpu_custom_call.1} parent=11 // pred_fallthru
          _
      $region12: #{tpu_custom_call.1} parent=5 // pred_fallthru
        _
      %p127 = scmp.lt.s32.totalorder %s12, 6
      // Predicated region
      $region21: #{tpu_custom_call.1} parent=5 // pred_check
        %p128 = pneg %p127
      $region22: #{tpu_custom_call.1} parent=5 // pred_check_branch
        %130 = sbr.rel (%p128) target = $region24
      $region23: #{tpu_custom_call.1} parent=5 // pred_region
        // Predicated region
        $region25: #{tpu_custom_call.1} parent=23 // pred_check
          %p131 = pneg %p32
        $region26: #{tpu_custom_call.1} parent=23 // pred_check_branch
          %133 = sbr.rel (%p131) target = $region28
        $region27: #{tpu_custom_call.1} parent=23 // pred_region
          %p134 = scmp.lt.s32.totalorder %s12, 5
          %s135 = scalar_select %p134, %s12, 5
          %s136 = smul.addr %s135, 4
          %s137 = scalar_lea.vmem %s0, %s136
        $region28: #{tpu_custom_call.1} parent=23 // pred_fallthru
          _
      $region24: #{tpu_custom_call.1} parent=5 // pred_fallthru
        _
      %p138 = scmp.le.s32.totalorder 1, %s12
      %p139 = scmp.lt.s32.totalorder %s12, 7
      %p140 = pnand %p138, %p139
      %p141 = pneg %p140
      // Predicated region
      $region29: #{tpu_custom_call.1} parent=5 // pred_check
        _
      $region30: #{tpu_custom_call.1} parent=5 // pred_check_branch
        %143 = sbr.rel (%p140) target = $region32
      $region31: #{tpu_custom_call.1} parent=5 // pred_region
        %s144 = ssub.s32 %s12, 1
        %p145 = scmp.lt.s32.totalorder %s17, 5
        %s146 = scalar_select %p145, %s17, 5
        %s147 = smul.addr %s146, 4
        %s148 = scalar_lea.vmem %s0, %s147
        %p149 = pneg %p38
        %p150 = pneg %p35
        %p151 = pneg %p59
        %p152 = pneg %p56
        %p153 = pneg %p80
        %p154 = pneg %p77
        %p155 = pneg %p106
        %p156 = pneg %p103
        %s157 = sand.u32 %s93, 1
        %s158 = scalar_lea.sflag [#allocation3], %s157
        %s159 = sand.u32 %s93, 1
        %s160 = smul.addr %s159, 4
        %s161 = scalar_lea.vmem [#allocation2], %s160
        %p162 = scmp.lt.s32.totalorder %s17, 5
        %s163 = scalar_select %p162, %s17, 5
        %s164 = smul.addr %s163, 4
        %s165 = scalar_lea.vmem %s0, %s164
        %v166 = vld [vmem:[%s165] sm:$0xf]
        %v167 = vunpack.c.l.bf16 %v166
        %v168 = vld [vmem:[%s1] sm:$0x1]
        %v169 = vunpack.c.l.bf16 %v168
        %171 = vset.pattern.permute.xlu0 0
        %172 = vperm.xlu0 %171, %v167
        %v173 = vpop.permute.xlu0 %172
        %v175 = vlaneseq
        %v176 = vshrl.u32 %v175, 7
        %v177 = vsub.s32 0, %v176
        %v178 = vrot.slane %v169, %v177
        %v179 = vmul.f32 %v173, %v178
        %v180 = vadd.f32 %v179, 0.0
        %s181 = scalar_lea.vmem %s1, 1
        %v182 = vld [vmem:[%s181] sm:$0x1]
        %v183 = vunpack.c.l.bf16 %v182
        %184 = vset.pattern.permute.xlu0 1
        %185 = vperm.xlu0 %184, %v167
        %v186 = vpop.permute.xlu0 %185
        %v188 = vlaneseq
        %v189 = vshrl.u32 %v188, 7
        %v190 = vsub.s32 0, %v189
        %v191 = vrot.slane %v183, %v190
        %v192 = vmul.f32 %v186, %v191
        %v193 = vadd.f32 %v180, %v192
        %s194 = scalar_lea.vmem %s1, 2
        %v195 = vld [vmem:[%s194] sm:$0x1]
        %v196 = vunpack.c.l.bf16 %v195
        %197 = vset.pattern.permute.xlu0 2
        %198 = vperm.xlu0 %197, %v167
        %v199 = vpop.permute.xlu0 %198
        %v201 = vlaneseq
        %v202 = vshrl.u32 %v201, 7
        %v203 = vsub.s32 0, %v202
        %v204 = vrot.slane %v196, %v203
        %v205 = vmul.f32 %v199, %v204
        %v206 = vadd.f32 %v193, %v205
        %s207 = scalar_lea.vmem %s1, 3
        %v208 = vld [vmem:[%s207] sm:$0x1]
        %v209 = vunpack.c.l.bf16 %v208
        %v210 = vlaneseq
        %v211 = vshrl.u32 %v210, 7
        %v212 = vsub.s32 0, %v211
        %v213 = vrot.slane %v209, %v212
        %v214 = vmul.f32 %v173, %v213
        %v216 = vrot.slane %v214, 1
        %v218 = vadd.f32 %v206, %v216
        %s219 = scalar_lea.vmem %s1, 4
        %v220 = vld [vmem:[%s219] sm:$0x1]
        %v221 = vunpack.c.l.bf16 %v220
        %v222 = vlaneseq
        %v223 = vshrl.u32 %v222, 7
        %v224 = vsub.s32 0, %v223
        %v225 = vrot.slane %v221, %v224
        %v226 = vmul.f32 %v186, %v225
        %v228 = vrot.slane %v226, 1
        %v230 = vadd.f32 %v218, %v228
        %v231 = vld [vmem:[%s2] sm:$0x1]
        %v233 = vlaneseq
        %v234 = vshrl.u32 %v233, 7
        %v235 = vsub.s32 0, %v234
        %v236 = vrot.slane %v231, %v235
        %v238 = vadd.f32 %v230, %v236
        %vm239 = vcmp.ge.f32.partialorder %v238, 0.0
        %v240 = vmul.f32 %v238, 0.1
        %v241 = vsel %vm239, %v238, %v240
        %v242 = vpack.c.bf16 %v241, %v241
        %243 = vst [vmem:[%s161] sm:$0x7] %v242
        %s244 = sand.u32 %s93, 1
        %s245 = scalar_lea.sflag [#allocation3], %s244
        %s246 = sand.u32 %s93, 1
        %s247 = smul.addr %s246, 4
        %s248 = scalar_lea.vmem [#allocation2], %s247
        // Predicated region
        $region33: #{tpu_custom_call.1} parent=31 // pred_check
          %p249 = pneg %p103
        $region34: #{tpu_custom_call.1} parent=31 // pred_check_branch
          %251 = sbr.rel (%p249) target = $region36
        $region35: #{tpu_custom_call.1} parent=31 // pred_region
          %s253 = ssub.s32 64, 64
          %254 = vsyncadd %s245, %s253
          %s255 = smul.addr %s17, 64
          %s256 = scalar_lea.hbm %s3, %s255
          %s258 = sshll.u32 %s248, 4
          %s259 = int_to_ptr.vmem [resolvable:$true] %s258
          %261 = dma.vmem_to_hbm [thread:$0]  %s259, 64, %s256, %s245
        $region36: #{tpu_custom_call.1} parent=31 // pred_fallthru
          _
      $region32: #{tpu_custom_call.1} parent=5 // pred_fallthru
        _
      %p262 = scmp.le.s32.totalorder 2, %s12
      // Predicated region
      $region37: #{tpu_custom_call.1} parent=5 // pred_check
        %p263 = pneg %p262
      $region38: #{tpu_custom_call.1} parent=5 // pred_check_branch
        %265 = sbr.rel (%p263) target = $region40
      $region39: #{tpu_custom_call.1} parent=5 // pred_region
        %s266 = ssub.s32 %s12, 2
        // Predicated region
        $region41: #{tpu_custom_call.1} parent=39 // pred_check
          %p267 = pneg %p109
        $region42: #{tpu_custom_call.1} parent=39 // pred_check_branch
          %269 = sbr.rel (%p267) target = $region44
        $region43: #{tpu_custom_call.1} parent=39 // pred_region
          %s270 = sand.u32 %s94, 1
          %s271 = scalar_lea.sflag [#allocation3], %s270
          %s272 = sand.u32 %s94, 1
          %s273 = smul.addr %s272, 4
          %s274 = scalar_lea.vmem [#allocation2], %s273
          %275 = dma.done %s271, 64
        $region44: #{tpu_custom_call.1} parent=39 // pred_fallthru
          _
      $region40: #{tpu_custom_call.1} parent=5 // pred_fallthru
        _
    $region6: #{tpu_custom_call.1} parent=1 // loop_footer
      %s16 = sadd.s32 1, %s12
    $region7: #{tpu_custom_call.1} parent=1 // loop_footer_branch
      %11 = sbr.rel target = $region3
    $region8: #{tpu_custom_call.1} parent=1 // loop_exit
      _
    %276 = vsyncpa [#allocation3], 1
    %s277 = scalar_lea.sflag [#allocation3], 1
    %278 = vsyncpa %s277, 1

</llo_original>
